<compile_context>
chip_gen: v6e
topology: v6e:2x2x1
jax: 0.10.0
libtpu: 0.0.40
codegen_flags: <defaults>
</compile_context>

<pallas_src>
from functools import partial

import jax
import jax.numpy as jnp
from jax.experimental import pallas as pl
from jax.experimental.pallas import tpu as pltpu

LRELU_SLOPE = 0.2
BN_EPS = 1e-5
SN_EPS = 1e-12


# ----------------------------------------------------------------------------
# Spectral-norm weight preprocessing (one PyTorch-style power iteration)
# ----------------------------------------------------------------------------
def _l2_normalize(v):
    # PyTorch F.normalize semantics: v / max(||v||, eps)
    return v / jnp.maximum(jnp.linalg.norm(v), SN_EPS)


def spectral_norm_weight(w_oihw, u0):
    cout = w_oihw.shape[0]
    w_mat = w_oihw.reshape(cout, -1)
    u = _l2_normalize(u0)
    v = _l2_normalize(w_mat.T @ u)
    u = _l2_normalize(w_mat @ v)
    sigma = u @ (w_mat @ v)
    return w_oihw / sigma


# ----------------------------------------------------------------------------
# Fused Pallas kernel: DownBlock (conv + BN + LeakyReLU) + final 4x4 conv
# ----------------------------------------------------------------------------
def _fused_single_disc_kernel(xcol_ref, w1_ref, gb_ref, wf_ref, o_ref, *, oh, kf):
    """Channels live on sublanes, flattened (b, row, col) positions on lanes.

    xcol_ref : (K=16*cin, R=B*oh*oh) bf16  im2col'd + transposed input
    w1_ref   : (C1, K)               bf16  down-block conv weight
    gb_ref   : (C1, 2)               f32   [:,0]=gamma, [:,1]=beta (BatchNorm)
    wf_ref   : (C1, kf*kf)           f32   final-conv taps, column = i*kf + j
    o_ref    : (1, R)                f32   logits; lane r = b*oh*oh + oi*oh + oj
    """
    R = xcol_ref.shape[1]

    # ---- DownBlock conv (k=4, s=2, p=1): ONE MXU matmul, f32 accumulation
    acc = jnp.dot(w1_ref[...], xcol_ref[...],
                  preferred_element_type=jnp.float32)            # (C1, R)
    # conv bias intentionally omitted: it cancels exactly under training-mode BN.

    # ---- BatchNorm2d (training-mode batch stats over N*H*W, two-pass) + LeakyReLU
    gb = gb_ref[...]
    inv_n = 1.0 / R
    mean = jnp.sum(acc, axis=1, keepdims=True) * inv_n            # (C1, 1) lane reduce
    cen = acc - mean
    var = jnp.sum(cen * cen, axis=1, keepdims=True) * inv_n       # >= 0 by construction
    scale = gb[:, 0:1] * jax.lax.rsqrt(var + BN_EPS)              # EUP rsqrt
    y = cen * scale + gb[:, 1:2]
    y = jnp.where(y > 0, y, LRELU_SLOPE * y)                      # (C1, R) f32

    # ---- final conv (k=4, s=1, p=0, cout=1): static lane rolls (XLU) + VPU FMA
    # tap (i, j) needs y[:, r + i*oh + j]; pltpu.roll(y, R - s) == jnp.roll(y, -s),
    # i.e. rolled[:, r] = y[:, (r + s) % R]. Wrapped lanes only land on output
    # rows that the wrapper discards (oi/oj >= OS), so they never matter.
    wf = wf_ref[...]
    facc = y * wf[:, 0:1]                                         # tap (0, 0)
    for i in range(kf):
        for j in range(kf):
            if i == 0 and j == 0:
                continue
            s = i * oh + j
            tap = pltpu.roll(y, (R - s) % R, axis=1)
            facc = facc + tap * wf[:, i * kf + j:i * kf + j + 1]

    # channel reduction -> lane-dense (1, R) row, single unmasked 128-lane store
    o_ref[...] = jnp.sum(facc, axis=0, keepdims=True)


def _vmem_spec():
    return pl.BlockSpec(memory_space=pltpu.MemorySpace.VMEM)


# ----------------------------------------------------------------------------
# Forward wrapper: cheap layout prep (pad + im2col + transpose) + one pallas_call
# ----------------------------------------------------------------------------
@jax.jit
def single_disc_forward(x_nchw, w1_packed, gb, wf_packed):
    B, C, H, _ = x_nchw.shape
    KF = 4                       # both conv kernels are 4x4
    OH = H // 2                  # down-block output spatial (8)
    OS = OH - KF + 1             # final output spatial (5)
    R = B * OH * OH              # flattened rows (128 for B=2)

    # NCHW -> NHWC, pad=1, im2col for the k=4/s=2 conv, flatten, transpose.
    # All on a ~10-20 KB tensor: a handful of XLA ops, negligible vs. per-call cost.
    x = jnp.transpose(x_nchw, (0, 2, 3, 1))
    xp = jnp.pad(x, ((0, 0), (1, 1), (1, 1), (0, 0)))             # (B, H+2, H+2, C)
    cols = [xp[:, di:di + 2 * OH:2, dj:dj + 2 * OH:2, :]
            for di in range(KF) for dj in range(KF)]              # 16 x (B, OH, OH, C)
    xcol = jnp.concatenate(cols, axis=-1).reshape(R, KF * KF * C)  # (R, 64)
    xcol_t = xcol.T.astype(jnp.bfloat16)                          # (64, R) bf16 MXU operand

    # NOTE(perf): for production use, batch several images / discriminator scales
    # into one call (rows >> 128) and add a leading "parallel" grid axis so v7x's
    # second TensorCore is used; at B=2 a single block is the right shape.
    out = pl.pallas_call(
        partial(_fused_single_disc_kernel, oh=OH, kf=KF),
        out_shape=jax.ShapeDtypeStruct((1, R), jnp.float32),
        in_specs=[_vmem_spec(), _vmem_spec(), _vmem_spec(), _vmem_spec()],
        out_specs=_vmem_spec(),
    )(xcol_t, w1_packed, gb, wf_packed)

    # lane-dense (1, R) -> (B, OH, OH) -> keep the OS x OS valid window -> NCHW
    out = out.reshape(B, OH, OH)[:, :OS, :OS]
    return out[:, None, :, :]


# ----------------------------------------------------------------------------
# Deterministic parameters mirroring SingleDisc.__init__ (kernel-ready layout)
# ----------------------------------------------------------------------------
def build_params(key, nc, ndf, start_sz, end_sz):
    channel_dict = {4: 512, 8: 512, 16: 256, 32: 128, 64: 64, 128: 64,
                    256: 32, 512: 16, 1024: 8}
    nfc = {k: ndf for k in channel_dict}
    nfc[start_sz] = nc                      # nc given, head is None
    assert start_sz == 2 * end_sz, "fused kernel covers exactly one DownBlock"

    keys = jax.random.split(key, 6)
    cin, cmid = nfc[start_sz], nfc[start_sz // 2]

    # DownBlock: spectral_norm(Conv2d(cin, cmid, 4, 2, 1)) + BN + LeakyReLU
    w1 = 0.05 * jax.random.normal(keys[0], (cmid, cin, 4, 4), jnp.float32)  # OIHW
    w1 = spectral_norm_weight(w1, jax.random.normal(keys[1], (cmid,), jnp.float32))
    # (conv bias not materialized: it cancels exactly under training-mode BN)
    gamma = 1.0 + 0.1 * jax.random.normal(keys[2], (cmid,), jnp.float32)
    beta = 0.1 * jax.random.normal(keys[3], (cmid,), jnp.float32)

    # Final conv: spectral_norm(Conv2d(cmid, 1, 4, 1, 0, bias=False))
    wf = 0.05 * jax.random.normal(keys[4], (1, cmid, 4, 4), jnp.float32)    # OIHW
    wf = spectral_norm_weight(wf, jax.random.normal(keys[5], (1,), jnp.float32))

    # ---- pack into kernel-ready (channels-on-sublanes) layouts ----
    # Down-block weight: OIHW -> (O, kh, kw, I) -> (C1, 16*cin) bf16.
    # Column k = (di*4 + dj)*cin + c, matching the wrapper's im2col ordering.
    w1_packed = (jnp.transpose(w1, (0, 2, 3, 1))
                 .reshape(cmid, 4 * 4 * cin)
                 .astype(jnp.bfloat16))
    gb = jnp.stack([gamma, beta], axis=1)                                   # (C1, 2)
    wf_packed = wf[0].reshape(cmid, 16)                                     # (C1, 16), col = i*4 + j
    return w1_packed, gb, wf_packed


if __name__ == "__main__":
    B, nc, ndf, start_sz, end_sz = 2, 4, 32, 16, 8

    w1_packed, gb, wf_packed = build_params(jax.random.PRNGKey(0),
                                            nc, ndf, start_sz, end_sz)
    x = jax.random.normal(jax.random.PRNGKey(0), (B, nc, start_sz, start_sz),
                          jnp.float32)

    out = single_disc_forward(x, w1_packed, gb, wf_packed)
    out = jax.block_until_ready(out)

    # 16 -> DownBlock -> 8 -> Conv2d(k=4, s=1, p=0) -> 5 ; channels -> 1
    assert out.shape == (B, 1, 5, 5), out.shape
    assert out.dtype == jnp.float32
    assert bool(jnp.all(jnp.isfinite(out)))
    print("KERNEL_OK")
</pallas_src>

<mosaic_0001>
module attributes {stable_mosaic.version = 11 : i64} {
  func.func @_fused_single_disc_kernel(%arg0: memref<64x128xbf16, #tpu.memory_space<vmem>>, %arg1: memref<32x64xbf16, #tpu.memory_space<vmem>>, %arg2: memref<32x2xf32, #tpu.memory_space<vmem>>, %arg3: memref<32x16xf32, #tpu.memory_space<vmem>>, %arg4: memref<1x128xf32, #tpu.memory_space<vmem>>) attributes {dimension_semantics = [], scalar_prefetch = 0 : i64, scratch_operands = 0 : i64, tpu.core_type = #tpu.core_type<tc>} {
    %c0 = arith.constant 0 : index
    %c0_0 = arith.constant 0 : index
    %0 = vector.load %arg1[%c0, %c0_0] : memref<32x64xbf16, #tpu.memory_space<vmem>>, vector<32x64xbf16>
    %c0_1 = arith.constant 0 : index
    %c0_2 = arith.constant 0 : index
    %1 = vector.load %arg0[%c0_1, %c0_2] : memref<64x128xbf16, #tpu.memory_space<vmem>>, vector<64x128xbf16>
    %cst = arith.constant dense<0.000000e+00> : vector<32x128xf32>
    %2 = tpu.matmul %0, %1, %cst {dimension_numbers = #tpu.dot_dimension_numbers<[1], [0], [0], [1], [0, 0, 1, 1], [], []>} : vector<32x64xbf16>, vector<64x128xbf16>, vector<32x128xf32> -> vector<32x128xf32>
    %c0_3 = arith.constant 0 : index
    %c0_4 = arith.constant 0 : index
    %3 = vector.load %arg2[%c0_3, %c0_4] : memref<32x2xf32, #tpu.memory_space<vmem>>, vector<32x2xf32>
    %cst_5 = arith.constant dense<0.000000e+00> : vector<32xf32>
    %4 = vector.multi_reduction <add>, %2, %cst_5 [1] : vector<32x128xf32> to vector<32xf32>
    %5 = vector.shape_cast %4 : vector<32xf32> to vector<32x1xf32>
    %cst_6 = arith.constant 7.812500e-03 : f32
    %6 = vector.broadcast %cst_6 : f32 to vector<32x1xf32>
    %7 = arith.mulf %5, %6 : vector<32x1xf32>
    %8 = vector.broadcast %7 : vector<32x1xf32> to vector<32x128xf32>
    %9 = arith.subf %2, %8 : vector<32x128xf32>
    %10 = arith.mulf %9, %9 : vector<32x128xf32>
    %cst_7 = arith.constant dense<0.000000e+00> : vector<32xf32>
    %11 = vector.multi_reduction <add>, %10, %cst_7 [1] : vector<32x128xf32> to vector<32xf32>
    %12 = vector.shape_cast %11 : vector<32xf32> to vector<32x1xf32>
    %cst_8 = arith.constant 7.812500e-03 : f32
    %13 = vector.broadcast %cst_8 : f32 to vector<32x1xf32>
    %14 = arith.mulf %12, %13 : vector<32x1xf32>
    %15 = vector.extract_strided_slice %3 {offsets = [0, 0], sizes = [32, 1], strides = [1, 1]} : vector<32x2xf32> to vector<32x1xf32>
    %cst_9 = arith.constant 9.99999974E-6 : f32
    %16 = vector.broadcast %cst_9 : f32 to vector<32x1xf32>
    %17 = arith.addf %14, %16 : vector<32x1xf32>
    %18 = math.rsqrt %17 : vector<32x1xf32>
    %19 = arith.mulf %15, %18 : vector<32x1xf32>
    %20 = vector.broadcast %19 : vector<32x1xf32> to vector<32x128xf32>
    %21 = arith.mulf %9, %20 : vector<32x128xf32>
    %22 = vector.extract_strided_slice %3 {offsets = [0, 1], sizes = [32, 1], strides = [1, 1]} : vector<32x2xf32> to vector<32x1xf32>
    %23 = vector.broadcast %22 : vector<32x1xf32> to vector<32x128xf32>
    %24 = arith.addf %21, %23 : vector<32x128xf32>
    %cst_10 = arith.constant 0.000000e+00 : f32
    %25 = vector.broadcast %cst_10 : f32 to vector<32x128xf32>
    %26 = arith.cmpf ogt, %24, %25 : vector<32x128xf32>
    %cst_11 = arith.constant 2.000000e-01 : f32
    %27 = vector.broadcast %cst_11 : f32 to vector<32x128xf32>
    %28 = arith.mulf %27, %24 : vector<32x128xf32>
    %29 = arith.select %26, %24, %28 : vector<32x128xi1>, vector<32x128xf32>
    %c0_12 = arith.constant 0 : index
    %c0_13 = arith.constant 0 : index
    %30 = vector.load %arg3[%c0_12, %c0_13] : memref<32x16xf32, #tpu.memory_space<vmem>>, vector<32x16xf32>
    %31 = vector.extract_strided_slice %30 {offsets = [0, 0], sizes = [32, 1], strides = [1, 1]} : vector<32x16xf32> to vector<32x1xf32>
    %32 = vector.broadcast %31 : vector<32x1xf32> to vector<32x128xf32>
    %33 = arith.mulf %29, %32 : vector<32x128xf32>
    %c127_i32 = arith.constant 127 : i32
    %34 = tpu.dynamic_rotate %29 by %c127_i32 dim 1 : vector<32x128xf32>, i32 -> vector<32x128xf32>
    %35 = vector.extract_strided_slice %30 {offsets = [0, 1], sizes = [32, 1], strides = [1, 1]} : vector<32x16xf32> to vector<32x1xf32>
    %36 = vector.broadcast %35 : vector<32x1xf32> to vector<32x128xf32>
    %37 = arith.mulf %34, %36 : vector<32x128xf32>
    %38 = arith.addf %33, %37 : vector<32x128xf32>
    %c126_i32 = arith.constant 126 : i32
    %39 = tpu.dynamic_rotate %29 by %c126_i32 dim 1 : vector<32x128xf32>, i32 -> vector<32x128xf32>
    %40 = vector.extract_strided_slice %30 {offsets = [0, 2], sizes = [32, 1], strides = [1, 1]} : vector<32x16xf32> to vector<32x1xf32>
    %41 = vector.broadcast %40 : vector<32x1xf32> to vector<32x128xf32>
    %42 = arith.mulf %39, %41 : vector<32x128xf32>
    %43 = arith.addf %38, %42 : vector<32x128xf32>
    %c125_i32 = arith.constant 125 : i32
    %44 = tpu.dynamic_rotate %29 by %c125_i32 dim 1 : vector<32x128xf32>, i32 -> vector<32x128xf32>
    %45 = vector.extract_strided_slice %30 {offsets = [0, 3], sizes = [32, 1], strides = [1, 1]} : vector<32x16xf32> to vector<32x1xf32>
    %46 = vector.broadcast %45 : vector<32x1xf32> to vector<32x128xf32>
    %47 = arith.mulf %44, %46 : vector<32x128xf32>
    %48 = arith.addf %43, %47 : vector<32x128xf32>
    %c120_i32 = arith.constant 120 : i32
    %49 = tpu.dynamic_rotate %29 by %c120_i32 dim 1 : vector<32x128xf32>, i32 -> vector<32x128xf32>
    %50 = vector.extract_strided_slice %30 {offsets = [0, 4], sizes = [32, 1], strides = [1, 1]} : vector<32x16xf32> to vector<32x1xf32>
    %51 = vector.broadcast %50 : vector<32x1xf32> to vector<32x128xf32>
    %52 = arith.mulf %49, %51 : vector<32x128xf32>
    %53 = arith.addf %48, %52 : vector<32x128xf32>
    %c119_i32 = arith.constant 119 : i32
    %54 = tpu.dynamic_rotate %29 by %c119_i32 dim 1 : vector<32x128xf32>, i32 -> vector<32x128xf32>
    %55 = vector.extract_strided_slice %30 {offsets = [0, 5], sizes = [32, 1], strides = [1, 1]} : vector<32x16xf32> to vector<32x1xf32>
    %56 = vector.broadcast %55 : vector<32x1xf32> to vector<32x128xf32>
    %57 = arith.mulf %54, %56 : vector<32x128xf32>
    %58 = arith.addf %53, %57 : vector<32x128xf32>
    %c118_i32 = arith.constant 118 : i32
    %59 = tpu.dynamic_rotate %29 by %c118_i32 dim 1 : vector<32x128xf32>, i32 -> vector<32x128xf32>
    %60 = vector.extract_strided_slice %30 {offsets = [0, 6], sizes = [32, 1], strides = [1, 1]} : vector<32x16xf32> to vector<32x1xf32>
    %61 = vector.broadcast %60 : vector<32x1xf32> to vector<32x128xf32>
    %62 = arith.mulf %59, %61 : vector<32x128xf32>
    %63 = arith.addf %58, %62 : vector<32x128xf32>
    %c117_i32 = arith.constant 117 : i32
    %64 = tpu.dynamic_rotate %29 by %c117_i32 dim 1 : vector<32x128xf32>, i32 -> vector<32x128xf32>
    %65 = vector.extract_strided_slice %30 {offsets = [0, 7], sizes = [32, 1], strides = [1, 1]} : vector<32x16xf32> to vector<32x1xf32>
    %66 = vector.broadcast %65 : vector<32x1xf32> to vector<32x128xf32>
    %67 = arith.mulf %64, %66 : vector<32x128xf32>
    %68 = arith.addf %63, %67 : vector<32x128xf32>
    %c112_i32 = arith.constant 112 : i32
    %69 = tpu.dynamic_rotate %29 by %c112_i32 dim 1 : vector<32x128xf32>, i32 -> vector<32x128xf32>
    %70 = vector.extract_strided_slice %30 {offsets = [0, 8], sizes = [32, 1], strides = [1, 1]} : vector<32x16xf32> to vector<32x1xf32>
    %71 = vector.broadcast %70 : vector<32x1xf32> to vector<32x128xf32>
    %72 = arith.mulf %69, %71 : vector<32x128xf32>
    %73 = arith.addf %68, %72 : vector<32x128xf32>
    %c111_i32 = arith.constant 111 : i32
    %74 = tpu.dynamic_rotate %29 by %c111_i32 dim 1 : vector<32x128xf32>, i32 -> vector<32x128xf32>
    %75 = vector.extract_strided_slice %30 {offsets = [0, 9], sizes = [32, 1], strides = [1, 1]} : vector<32x16xf32> to vector<32x1xf32>
    %76 = vector.broadcast %75 : vector<32x1xf32> to vector<32x128xf32>
    %77 = arith.mulf %74, %76 : vector<32x128xf32>
    %78 = arith.addf %73, %77 : vector<32x128xf32>
    %c110_i32 = arith.constant 110 : i32
    %79 = tpu.dynamic_rotate %29 by %c110_i32 dim 1 : vector<32x128xf32>, i32 -> vector<32x128xf32>
    %80 = vector.extract_strided_slice %30 {offsets = [0, 10], sizes = [32, 1], strides = [1, 1]} : vector<32x16xf32> to vector<32x1xf32>
    %81 = vector.broadcast %80 : vector<32x1xf32> to vector<32x128xf32>
    %82 = arith.mulf %79, %81 : vector<32x128xf32>
    %83 = arith.addf %78, %82 : vector<32x128xf32>
    %c109_i32 = arith.constant 109 : i32
    %84 = tpu.dynamic_rotate %29 by %c109_i32 dim 1 : vector<32x128xf32>, i32 -> vector<32x128xf32>
    %85 = vector.extract_strided_slice %30 {offsets = [0, 11], sizes = [32, 1], strides = [1, 1]} : vector<32x16xf32> to vector<32x1xf32>
    %86 = vector.broadcast %85 : vector<32x1xf32> to vector<32x128xf32>
    %87 = arith.mulf %84, %86 : vector<32x128xf32>
    %88 = arith.addf %83, %87 : vector<32x128xf32>
    %c104_i32 = arith.constant 104 : i32
    %89 = tpu.dynamic_rotate %29 by %c104_i32 dim 1 : vector<32x128xf32>, i32 -> vector<32x128xf32>
    %90 = vector.extract_strided_slice %30 {offsets = [0, 12], sizes = [32, 1], strides = [1, 1]} : vector<32x16xf32> to vector<32x1xf32>
    %91 = vector.broadcast %90 : vector<32x1xf32> to vector<32x128xf32>
    %92 = arith.mulf %89, %91 : vector<32x128xf32>
    %93 = arith.addf %88, %92 : vector<32x128xf32>
    %c103_i32 = arith.constant 103 : i32
    %94 = tpu.dynamic_rotate %29 by %c103_i32 dim 1 : vector<32x128xf32>, i32 -> vector<32x128xf32>
    %95 = vector.extract_strided_slice %30 {offsets = [0, 13], sizes = [32, 1], strides = [1, 1]} : vector<32x16xf32> to vector<32x1xf32>
    %96 = vector.broadcast %95 : vector<32x1xf32> to vector<32x128xf32>
    %97 = arith.mulf %94, %96 : vector<32x128xf32>
    %98 = arith.addf %93, %97 : vector<32x128xf32>
    %c102_i32 = arith.constant 102 : i32
    %99 = tpu.dynamic_rotate %29 by %c102_i32 dim 1 : vector<32x128xf32>, i32 -> vector<32x128xf32>
    %100 = vector.extract_strided_slice %30 {offsets = [0, 14], sizes = [32, 1], strides = [1, 1]} : vector<32x16xf32> to vector<32x1xf32>
    %101 = vector.broadcast %100 : vector<32x1xf32> to vector<32x128xf32>
    %102 = arith.mulf %99, %101 : vector<32x128xf32>
    %103 = arith.addf %98, %102 : vector<32x128xf32>
    %c101_i32 = arith.constant 101 : i32
    %104 = tpu.dynamic_rotate %29 by %c101_i32 dim 1 : vector<32x128xf32>, i32 -> vector<32x128xf32>
    %105 = vector.extract_strided_slice %30 {offsets = [0, 15], sizes = [32, 1], strides = [1, 1]} : vector<32x16xf32> to vector<32x1xf32>
    %106 = vector.broadcast %105 : vector<32x1xf32> to vector<32x128xf32>
    %107 = arith.mulf %104, %106 : vector<32x128xf32>
    %108 = arith.addf %103, %107 : vector<32x128xf32>
    %cst_14 = arith.constant dense<0.000000e+00> : vector<128xf32>
    %109 = vector.multi_reduction <add>, %108, %cst_14 [0] : vector<32x128xf32> to vector<128xf32>
    %110 = vector.shape_cast %109 : vector<128xf32> to vector<1x128xf32>
    %c0_15 = arith.constant 0 : index
    %c0_16 = arith.constant 0 : index
    %111 = vector.load %arg4[%c0_15, %c0_16] : memref<1x128xf32, #tpu.memory_space<vmem>>, vector<1x128xf32>
    tpu.vector_store %arg4[%c0_15, %c0_16], %110 {strides = array<i32>} : memref<1x128xf32, #tpu.memory_space<vmem>>, vector<1x128xf32>,
    return
  }
}

</mosaic_0001>

<llo_original>
// kernel: single_disc_forward.1
$region0: #{single_disc_forward.1}
  #allocation0 [shape = 'u32[]', space=smem, size = 0x4, offset = 0x4, fixed_abs, tag = 'smem constant byte address 0x4 - core index']
  #allocation1 [shape = 'u32[144,128]{1,0:T(1,128)}', space=vmem, size = 0x12000, scoped, tag = 'internal scratch']
  %s0 = inlined_call_operand.vmem [shape: bf16[64,128], index: 0, kind: input, shape index: {}]
  %s1 = inlined_call_operand.vmem [shape: bf16[32,64], index: 1, kind: input, shape index: {}]
  %s2 = inlined_call_operand.vmem [shape: f32[32,2], index: 2, kind: input, shape index: {}]
  %s3 = inlined_call_operand.vmem [shape: f32[32,16], index: 3, kind: input, shape index: {}]
  %s4 = inlined_call_operand.vmem [shape: f32[1,128], index: 4, kind: output, shape index: {}]
  %s5 = sld [smem:[#allocation0]]
  $region26: #{single_disc_forward.1} parent=0
    _
  %s7 = ssub.s32 1, %s5
  %s8 = scalar_select 0, %s7, %s5
  // Predicated region
  $region2: #{single_disc_forward.1} parent=0 // pred_check
    _
  $region3: #{single_disc_forward.1} parent=0 // pred_check_branch
    %10 = sbr.rel (0) target = $region5
  $region4: #{single_disc_forward.1} parent=0 // pred_region
    _
  $region5: #{single_disc_forward.1} parent=0 // pred_fallthru
    _
  // Predicated region
  $region6: #{single_disc_forward.1} parent=0 // pred_check
    _
  $region7: #{single_disc_forward.1} parent=0 // pred_check_branch
    %12 = sbr.rel (0) target = $region9
  $region8: #{single_disc_forward.1} parent=0 // pred_region
    _
  $region9: #{single_disc_forward.1} parent=0 // pred_fallthru
    _
  // Predicated region
  $region10: #{single_disc_forward.1} parent=0 // pred_check
    _
  $region11: #{single_disc_forward.1} parent=0 // pred_check_branch
    %14 = sbr.rel (0) target = $region13
  $region12: #{single_disc_forward.1} parent=0 // pred_region
    _
  $region13: #{single_disc_forward.1} parent=0 // pred_fallthru
    _
  // Predicated region
  $region14: #{single_disc_forward.1} parent=0 // pred_check
    _
  $region15: #{single_disc_forward.1} parent=0 // pred_check_branch
    %16 = sbr.rel (0) target = $region17
  $region16: #{single_disc_forward.1} parent=0 // pred_region
    _
  $region17: #{single_disc_forward.1} parent=0 // pred_fallthru
    _
  %v18 = vld [vmem:[%s1] sm:$0xf]
  %v19 = vld [vmem:[%s1 + $0x4] sm:$0xf]
  %v20 = vld [vmem:[%s1 + $0x8] sm:$0xf]
  %v21 = vld [vmem:[%s1 + $0xc] sm:$0xf]
  %v22 = vld [vmem:[%s0] sm:$0xf]
  %v23 = vld [vmem:[%s0 + $0x4] sm:$0xf]
  %v24 = vld [vmem:[%s0 + $0x8] sm:$0xf]
  %v25 = vld [vmem:[%s0 + $0xc] sm:$0xf]
  %v26 = vld [vmem:[%s0 + $0x10] sm:$0xf]
  %v27 = vld [vmem:[%s0 + $0x14] sm:$0xf]
  %v28 = vld [vmem:[%s0 + $0x18] sm:$0xf]
  %v29 = vld [vmem:[%s0 + $0x1c] sm:$0xf]
  %v34 = vunpack.c.l.b16 %v18
  %v35 = vunpack.c.l.b16 %v19
  %v36 = vunpack.c.l.b16 %v20
  %v37 = vunpack.c.l.b16 %v21
  %v38 = vpack.c.b16 %v35, %v34
  %v39 = vpack.c.b16 %v37, %v36
  %v48 = vunpack.c.l.b16 %v22
  %v49 = vunpack.c.l.b16 %v23
  %v50 = vunpack.c.l.b16 %v24
  %v51 = vunpack.c.l.b16 %v25
  %v52 = vunpack.c.l.b16 %v26
  %v53 = vunpack.c.l.b16 %v27
  %v54 = vunpack.c.l.b16 %v28
  %v55 = vunpack.c.l.b16 %v29
  %v56 = vpack.c.b16 %v49, %v48
  %v57 = vpack.c.b16 %v51, %v50
  %v58 = vpack.c.b16 %v53, %v52
  %v59 = vpack.c.b16 %v55, %v54
  %vm64 = vcmask 523264
  %v66 = vsel %vm64, %v38, 0
  %v69 = vsel %vm64, %v39, 0
  %71 = vmatprep.subr.bf16.mxu0 0
  %72 = vmatpush1.bf16.msra.mxu0 0
  %73 = vmatprep.subr.bf16.mxu0 0
  %74 = vmatpush1.bf16.msra.mxu0 0
  %75 = vmatprep.subr.bf16.mxu0 0
  %76 = vmatpush1.bf16.msra.mxu0 0
  %77 = vmatprep.subr.bf16.mxu0 0
  %78 = vmatpush1.bf16.msra.mxu0 0
  %79 = vmatprep.subr.bf16.mxu0 0
  %80 = vmatpush1.bf16.msra.mxu0 %v59
  %81 = vmatprep.subr.bf16.mxu0 0
  %82 = vmatpush1.bf16.msra.mxu0 %v58
  %83 = vmatprep.subr.bf16.mxu0 0
  %84 = vmatpush1.bf16.msra.mxu0 %v57
  %85 = vmatprep.subr.bf16.mxu0 0
  %86 = vmatpush1.bf16.msra.mxu0 %v56
  %87 = vmatprep.subr.bf16.mxu0 0
  %88 = vmatpush2.bf16.msra.mxu0 0
  %89 = vmatprep.subr.bf16.mxu0 0
  %90 = vmatpush2.bf16.msra.mxu0 0
  %91 = vmatprep.subr.bf16.mxu0 0
  %92 = vmatpush2.bf16.msra.mxu0 0
  %93 = vmatprep.subr.bf16.mxu0 0
  %94 = vmatpush2.bf16.msra.mxu0 0
  %95 = vmatprep.subr.bf16.mxu0 0
  %96 = vmatpush2.bf16.msra.mxu0 0
  %97 = vmatprep.subr.bf16.mxu0 0
  %98 = vmatpush2.bf16.msra.mxu0 0
  %99 = vmatprep.subr.bf16.mxu0 0
  %100 = vmatpush2.bf16.msra.mxu0 0
  %101 = vmatprep.subr.bf16.mxu0 0
  %102 = vmatpush2.bf16.msra.mxu0 0
  %103 = vmatprep.mubr.bf16.mxu0 0
  %104 = vmatmul.mubr.bf16.gmra.mxu0 %v66
  %v105 = vpop.f32.mrf.mxu0
  %v106 = vadd.f32 0.0, %v105
  %v107 = vpop.f32.mrf.mxu0
  %v108 = vpop.f32.mrf.mxu0
  %v109 = vadd.f32 0.0, %v108
  %v110 = vpop.f32.mrf.mxu0
  %111 = vmatprep.mubr.bf16.mxu0 0
  %112 = vmatmul.mubr.bf16.gmra.mxu0 %v69
  %v113 = vpop.f32.mrf.mxu0
  %v114 = vadd.f32 0.0, %v113
  %v115 = vpop.f32.mrf.mxu0
  %v116 = vpop.f32.mrf.mxu0
  %v117 = vadd.f32 0.0, %v116
  %v118 = vpop.f32.mrf.mxu0
  %119 = vdwg.mxu0
  %v120 = vld [vmem:[%s2] sm:$0xff]
  %v121 = vld [vmem:[%s2 + $0x8] sm:$0xff]
  %v122 = vld [vmem:[%s2 + $0x10] sm:$0xff]
  %v123 = vld [vmem:[%s2 + $0x18] sm:$0xff]
  %124 = vadd.xlane.f32.xlu0 %v106
  %v125 = vpop.xlane.xlu0 %124
  %126 = vadd.xlane.f32.xlu0 %v109
  %v127 = vpop.xlane.xlu0 %126
  %128 = vadd.xlane.f32.xlu0 %v114
  %v129 = vpop.xlane.xlu0 %128
  %130 = vadd.xlane.f32.xlu0 %v117
  %v131 = vpop.xlane.xlu0 %130
  %v132 = vmul.f32 %v125, 0.0078125
  %v133 = vmul.f32 %v127, 0.0078125
  %v134 = vmul.f32 %v129, 0.0078125
  %v135 = vmul.f32 %v131, 0.0078125
  %v136 = vsub.f32 %v106, %v132
  %v137 = vsub.f32 %v109, %v133
  %v138 = vsub.f32 %v114, %v134
  %v139 = vsub.f32 %v117, %v135
  %v140 = vmul.f32 %v136, %v136
  %v141 = vmul.f32 %v137, %v137
  %v142 = vmul.f32 %v138, %v138
  %v143 = vmul.f32 %v139, %v139
  %144 = vadd.xlane.f32.xlu0 %v140
  %v145 = vpop.xlane.xlu0 %144
  %146 = vadd.xlane.f32.xlu0 %v141
  %v147 = vpop.xlane.xlu0 %146
  %148 = vadd.xlane.f32.xlu0 %v142
  %v149 = vpop.xlane.xlu0 %148
  %150 = vadd.xlane.f32.xlu0 %v143
  %v151 = vpop.xlane.xlu0 %150
  %v152 = vmul.f32 %v145, 0.0078125
  %v153 = vmul.f32 %v147, 0.0078125
  %v154 = vmul.f32 %v149, 0.0078125
  %v155 = vmul.f32 %v151, 0.0078125
  %v156 = vadd.f32 %v152, 1e-05
  %v157 = vadd.f32 %v153, 1e-05
  %v158 = vadd.f32 %v154, 1e-05
  %v159 = vadd.f32 %v155, 1e-05
  %v160 = vrsqrt.pop %v156
  %v161 = vrsqrt.pop %v157
  %v162 = vrsqrt.pop %v158
  %v163 = vrsqrt.pop %v159
  %v164 = vmul.f32 %v120, %v160
  %v165 = vmul.f32 %v121, %v161
  %v166 = vmul.f32 %v122, %v162
  %v167 = vmul.f32 %v123, %v163
  %169 = vset.pattern.permute.xlu0 0
  %170 = vperm.xlu0 %169, %v164
  %v171 = vpop.permute.xlu0 %170
  %174 = vset.pattern.permute.xlu0 0
  %175 = vperm.xlu0 %174, %v165
  %v176 = vpop.permute.xlu0 %175
  %179 = vset.pattern.permute.xlu0 0
  %180 = vperm.xlu0 %179, %v166
  %v181 = vpop.permute.xlu0 %180
  %184 = vset.pattern.permute.xlu0 0
  %185 = vperm.xlu0 %184, %v167
  %v186 = vpop.permute.xlu0 %185
  %v188 = vmul.f32 %v136, %v171
  %v189 = vmul.f32 %v137, %v176
  %v190 = vmul.f32 %v138, %v181
  %v191 = vmul.f32 %v139, %v186
  %193 = vset.pattern.permute.xlu0 1
  %194 = vperm.xlu0 %193, %v120
  %v195 = vpop.permute.xlu0 %194
  %198 = vset.pattern.permute.xlu0 1
  %199 = vperm.xlu0 %198, %v121
  %v200 = vpop.permute.xlu0 %199
  %203 = vset.pattern.permute.xlu0 1
  %204 = vperm.xlu0 %203, %v122
  %v205 = vpop.permute.xlu0 %204
  %208 = vset.pattern.permute.xlu0 1
  %209 = vperm.xlu0 %208, %v123
  %v210 = vpop.permute.xlu0 %209
  %v212 = vadd.f32 %v188, %v195
  %v213 = vadd.f32 %v189, %v200
  %v214 = vadd.f32 %v190, %v205
  %v215 = vadd.f32 %v191, %v210
  %vm216 = vcmp.gt.f32.partialorder %v212, 0.0
  %vm217 = vcmp.gt.f32.partialorder %v213, 0.0
  %vm218 = vcmp.gt.f32.partialorder %v214, 0.0
  %vm219 = vcmp.gt.f32.partialorder %v215, 0.0
  %v220 = vmul.f32 %v212, 0.2
  %v221 = vmul.f32 %v213, 0.2
  %v222 = vmul.f32 %v214, 0.2
  %v223 = vmul.f32 %v215, 0.2
  %v224 = vsel %vm216, %v212, %v220
  %v225 = vsel %vm217, %v213, %v221
  %v226 = vsel %vm218, %v214, %v222
  %v227 = vsel %vm219, %v215, %v223
  %v228 = vld [vmem:[%s3] sm:$0xff]
  %v229 = vld [vmem:[%s3 + $0x8] sm:$0xff]
  %v230 = vld [vmem:[%s3 + $0x10] sm:$0xff]
  %v231 = vld [vmem:[%s3 + $0x18] sm:$0xff]
  %233 = vset.pattern.permute.xlu0 0
  %234 = vperm.xlu0 %233, %v228
  %v235 = vpop.permute.xlu0 %234
  %238 = vset.pattern.permute.xlu0 0
  %239 = vperm.xlu0 %238, %v229
  %v240 = vpop.permute.xlu0 %239
  %243 = vset.pattern.permute.xlu0 0
  %244 = vperm.xlu0 %243, %v230
  %v245 = vpop.permute.xlu0 %244
  %248 = vset.pattern.permute.xlu0 0
  %249 = vperm.xlu0 %248, %v231
  %v250 = vpop.permute.xlu0 %249
  %v252 = vmul.f32 %v224, %v235
  %v253 = vmul.f32 %v225, %v240
  %v254 = vmul.f32 %v226, %v245
  %v255 = vmul.f32 %v227, %v250
  %256 = vrot.lane.b32.xlu0 %v224, 127
  %v257 = vpop.permute.xlu0 %256
  %258 = vrot.lane.b32.xlu0 %v225, 127
  %v259 = vpop.permute.xlu0 %258
  %260 = vrot.lane.b32.xlu0 %v226, 127
  %v261 = vpop.permute.xlu0 %260
  %262 = vrot.lane.b32.xlu0 %v227, 127
  %v263 = vpop.permute.xlu0 %262
  %264 = vset.pattern.permute.xlu0 1
  %265 = vperm.xlu0 %264, %v228
  %v266 = vpop.permute.xlu0 %265
  %268 = vset.pattern.permute.xlu0 1
  %269 = vperm.xlu0 %268, %v229
  %v270 = vpop.permute.xlu0 %269
  %272 = vset.pattern.permute.xlu0 1
  %273 = vperm.xlu0 %272, %v230
  %v274 = vpop.permute.xlu0 %273
  %276 = vset.pattern.permute.xlu0 1
  %277 = vperm.xlu0 %276, %v231
  %v278 = vpop.permute.xlu0 %277
  %v280 = vmul.f32 %v257, %v266
  %v281 = vmul.f32 %v259, %v270
  %v282 = vmul.f32 %v261, %v274
  %v283 = vmul.f32 %v263, %v278
  %v284 = vadd.f32 %v252, %v280
  %v285 = vadd.f32 %v253, %v281
  %v286 = vadd.f32 %v254, %v282
  %v287 = vadd.f32 %v255, %v283
  %288 = vrot.lane.b32.xlu0 %v224, 126
  %v289 = vpop.permute.xlu0 %288
  %290 = vrot.lane.b32.xlu0 %v225, 126
  %v291 = vpop.permute.xlu0 %290
  %292 = vrot.lane.b32.xlu0 %v226, 126
  %v293 = vpop.permute.xlu0 %292
  %294 = vrot.lane.b32.xlu0 %v227, 126
  %v295 = vpop.permute.xlu0 %294
  %296 = vset.pattern.permute.xlu0 2
  %297 = vperm.xlu0 %296, %v228
  %v298 = vpop.permute.xlu0 %297
  %300 = vset.pattern.permute.xlu0 2
  %301 = vperm.xlu0 %300, %v229
  %v302 = vpop.permute.xlu0 %301
  %304 = vset.pattern.permute.xlu0 2
  %305 = vperm.xlu0 %304, %v230
  %v306 = vpop.permute.xlu0 %305
  %308 = vset.pattern.permute.xlu0 2
  %309 = vperm.xlu0 %308, %v231
  %v310 = vpop.permute.xlu0 %309
  %v312 = vmul.f32 %v289, %v298
  %v313 = vmul.f32 %v291, %v302
  %v314 = vmul.f32 %v293, %v306
  %v315 = vmul.f32 %v295, %v310
  %v316 = vadd.f32 %v284, %v312
  %v317 = vadd.f32 %v285, %v313
  %v318 = vadd.f32 %v286, %v314
  %v319 = vadd.f32 %v287, %v315
  %320 = vrot.lane.b32.xlu0 %v224, 125
  %v321 = vpop.permute.xlu0 %320
  %322 = vrot.lane.b32.xlu0 %v225, 125
  %v323 = vpop.permute.xlu0 %322
  %324 = vrot.lane.b32.xlu0 %v226, 125
  %v325 = vpop.permute.xlu0 %324
  %326 = vrot.lane.b32.xlu0 %v227, 125
  %v327 = vpop.permute.xlu0 %326
  %328 = vset.pattern.permute.xlu0 3
  %329 = vperm.xlu0 %328, %v228
  %v330 = vpop.permute.xlu0 %329
  %332 = vset.pattern.permute.xlu0 3
  %333 = vperm.xlu0 %332, %v229
  %v334 = vpop.permute.xlu0 %333
  %336 = vset.pattern.permute.xlu0 3
  %337 = vperm.xlu0 %336, %v230
  %v338 = vpop.permute.xlu0 %337
  %340 = vset.pattern.permute.xlu0 3
  %341 = vperm.xlu0 %340, %v231
  %v342 = vpop.permute.xlu0 %341
  %v344 = vmul.f32 %v321, %v330
  %v345 = vmul.f32 %v323, %v334
  %v346 = vmul.f32 %v325, %v338
  %v347 = vmul.f32 %v327, %v342
  %v348 = vadd.f32 %v316, %v344
  %v349 = vadd.f32 %v317, %v345
  %v350 = vadd.f32 %v318, %v346
  %v351 = vadd.f32 %v319, %v347
  %352 = vrot.lane.b32.xlu0 %v224, 120
  %v353 = vpop.permute.xlu0 %352
  %354 = vrot.lane.b32.xlu0 %v225, 120
  %v355 = vpop.permute.xlu0 %354
  %356 = vrot.lane.b32.xlu0 %v226, 120
  %v357 = vpop.permute.xlu0 %356
  %358 = vrot.lane.b32.xlu0 %v227, 120
  %v359 = vpop.permute.xlu0 %358
  %360 = vset.pattern.permute.xlu0 4
  %361 = vperm.xlu0 %360, %v228
  %v362 = vpop.permute.xlu0 %361
  %364 = vset.pattern.permute.xlu0 4
  %365 = vperm.xlu0 %364, %v229
  %v366 = vpop.permute.xlu0 %365
  %368 = vset.pattern.permute.xlu0 4
  %369 = vperm.xlu0 %368, %v230
  %v370 = vpop.permute.xlu0 %369
  %372 = vset.pattern.permute.xlu0 4
  %373 = vperm.xlu0 %372, %v231
  %v374 = vpop.permute.xlu0 %373
  %v376 = vmul.f32 %v353, %v362
  %v377 = vmul.f32 %v355, %v366
  %v378 = vmul.f32 %v357, %v370
  %v379 = vmul.f32 %v359, %v374
  %v380 = vadd.f32 %v348, %v376
  %v381 = vadd.f32 %v349, %v377
  %v382 = vadd.f32 %v350, %v378
  %v383 = vadd.f32 %v351, %v379
  %384 = vrot.lane.b32.xlu0 %v224, 119
  %v385 = vpop.permute.xlu0 %384
  %386 = vrot.lane.b32.xlu0 %v225, 119
  %v387 = vpop.permute.xlu0 %386
  %388 = vrot.lane.b32.xlu0 %v226, 119
  %v389 = vpop.permute.xlu0 %388
  %390 = vrot.lane.b32.xlu0 %v227, 119
  %v391 = vpop.permute.xlu0 %390
  %392 = vset.pattern.permute.xlu0 5
  %393 = vperm.xlu0 %392, %v228
  %v394 = vpop.permute.xlu0 %393
  %396 = vset.pattern.permute.xlu0 5
  %397 = vperm.xlu0 %396, %v229
  %v398 = vpop.permute.xlu0 %397
  %400 = vset.pattern.permute.xlu0 5
  %401 = vperm.xlu0 %400, %v230
  %v402 = vpop.permute.xlu0 %401
  %404 = vset.pattern.permute.xlu0 5
  %405 = vperm.xlu0 %404, %v231
  %v406 = vpop.permute.xlu0 %405
  %v408 = vmul.f32 %v385, %v394
  %v409 = vmul.f32 %v387, %v398
  %v410 = vmul.f32 %v389, %v402
  %v411 = vmul.f32 %v391, %v406
  %v412 = vadd.f32 %v380, %v408
  %v413 = vadd.f32 %v381, %v409
  %v414 = vadd.f32 %v382, %v410
  %v415 = vadd.f32 %v383, %v411
  %416 = vrot.lane.b32.xlu0 %v224, 118
  %v417 = vpop.permute.xlu0 %416
  %418 = vrot.lane.b32.xlu0 %v225, 118
  %v419 = vpop.permute.xlu0 %418
  %420 = vrot.lane.b32.xlu0 %v226, 118
  %v421 = vpop.permute.xlu0 %420
  %422 = vrot.lane.b32.xlu0 %v227, 118
  %v423 = vpop.permute.xlu0 %422
  %424 = vset.pattern.permute.xlu0 6
  %425 = vperm.xlu0 %424, %v228
  %v426 = vpop.permute.xlu0 %425
  %428 = vset.pattern.permute.xlu0 6
  %429 = vperm.xlu0 %428, %v229
  %v430 = vpop.permute.xlu0 %429
  %432 = vset.pattern.permute.xlu0 6
  %433 = vperm.xlu0 %432, %v230
  %v434 = vpop.permute.xlu0 %433
  %436 = vset.pattern.permute.xlu0 6
  %437 = vperm.xlu0 %436, %v231
  %v438 = vpop.permute.xlu0 %437
  %v440 = vmul.f32 %v417, %v426
  %v441 = vmul.f32 %v419, %v430
  %v442 = vmul.f32 %v421, %v434
  %v443 = vmul.f32 %v423, %v438
  %v444 = vadd.f32 %v412, %v440
  %v445 = vadd.f32 %v413, %v441
  %v446 = vadd.f32 %v414, %v442
  %v447 = vadd.f32 %v415, %v443
  %448 = vrot.lane.b32.xlu0 %v224, 117
  %v449 = vpop.permute.xlu0 %448
  %450 = vrot.lane.b32.xlu0 %v225, 117
  %v451 = vpop.permute.xlu0 %450
  %452 = vrot.lane.b32.xlu0 %v226, 117
  %v453 = vpop.permute.xlu0 %452
  %454 = vrot.lane.b32.xlu0 %v227, 117
  %v455 = vpop.permute.xlu0 %454
  %456 = vset.pattern.permute.xlu0 7
  %457 = vperm.xlu0 %456, %v228
  %v458 = vpop.permute.xlu0 %457
  %460 = vset.pattern.permute.xlu0 7
  %461 = vperm.xlu0 %460, %v229
  %v462 = vpop.permute.xlu0 %461
  %464 = vset.pattern.permute.xlu0 7
  %465 = vperm.xlu0 %464, %v230
  %v466 = vpop.permute.xlu0 %465
  %468 = vset.pattern.permute.xlu0 7
  %469 = vperm.xlu0 %468, %v231
  %v470 = vpop.permute.xlu0 %469
  %v472 = vmul.f32 %v449, %v458
  %v473 = vmul.f32 %v451, %v462
  %v474 = vmul.f32 %v453, %v466
  %v475 = vmul.f32 %v455, %v470
  %v476 = vadd.f32 %v444, %v472
  %v477 = vadd.f32 %v445, %v473
  %v478 = vadd.f32 %v446, %v474
  %v479 = vadd.f32 %v447, %v475
  %480 = vrot.lane.b32.xlu0 %v224, 112
  %v481 = vpop.permute.xlu0 %480
  %482 = vrot.lane.b32.xlu0 %v225, 112
  %v483 = vpop.permute.xlu0 %482
  %484 = vrot.lane.b32.xlu0 %v226, 112
  %v485 = vpop.permute.xlu0 %484
  %486 = vrot.lane.b32.xlu0 %v227, 112
  %v487 = vpop.permute.xlu0 %486
  %488 = vset.pattern.permute.xlu0 8
  %489 = vperm.xlu0 %488, %v228
  %v490 = vpop.permute.xlu0 %489
  %492 = vset.pattern.permute.xlu0 8
  %493 = vperm.xlu0 %492, %v229
  %v494 = vpop.permute.xlu0 %493
  %496 = vset.pattern.permute.xlu0 8
  %497 = vperm.xlu0 %496, %v230
  %v498 = vpop.permute.xlu0 %497
  %500 = vset.pattern.permute.xlu0 8
  %501 = vperm.xlu0 %500, %v231
  %v502 = vpop.permute.xlu0 %501
  %v504 = vmul.f32 %v481, %v490
  %v505 = vmul.f32 %v483, %v494
  %v506 = vmul.f32 %v485, %v498
  %v507 = vmul.f32 %v487, %v502
  %v508 = vadd.f32 %v476, %v504
  %v509 = vadd.f32 %v477, %v505
  %v510 = vadd.f32 %v478, %v506
  %v511 = vadd.f32 %v479, %v507
  %512 = vrot.lane.b32.xlu0 %v224, 111
  %v513 = vpop.permute.xlu0 %512
  %514 = vrot.lane.b32.xlu0 %v225, 111
  %v515 = vpop.permute.xlu0 %514
  %516 = vrot.lane.b32.xlu0 %v226, 111
  %v517 = vpop.permute.xlu0 %516
  %518 = vrot.lane.b32.xlu0 %v227, 111
  %v519 = vpop.permute.xlu0 %518
  %520 = vset.pattern.permute.xlu0 9
  %521 = vperm.xlu0 %520, %v228
  %v522 = vpop.permute.xlu0 %521
  %524 = vset.pattern.permute.xlu0 9
  %525 = vperm.xlu0 %524, %v229
  %v526 = vpop.permute.xlu0 %525
  %528 = vset.pattern.permute.xlu0 9
  %529 = vperm.xlu0 %528, %v230
  %v530 = vpop.permute.xlu0 %529
  %532 = vset.pattern.permute.xlu0 9
  %533 = vperm.xlu0 %532, %v231
  %v534 = vpop.permute.xlu0 %533
  %v536 = vmul.f32 %v513, %v522
  %v537 = vmul.f32 %v515, %v526
  %v538 = vmul.f32 %v517, %v530
  %v539 = vmul.f32 %v519, %v534
  %v540 = vadd.f32 %v508, %v536
  %v541 = vadd.f32 %v509, %v537
  %v542 = vadd.f32 %v510, %v538
  %v543 = vadd.f32 %v511, %v539
  %544 = vrot.lane.b32.xlu0 %v224, 110
  %v545 = vpop.permute.xlu0 %544
  %546 = vrot.lane.b32.xlu0 %v225, 110
  %v547 = vpop.permute.xlu0 %546
  %548 = vrot.lane.b32.xlu0 %v226, 110
  %v549 = vpop.permute.xlu0 %548
  %550 = vrot.lane.b32.xlu0 %v227, 110
  %v551 = vpop.permute.xlu0 %550
  %552 = vset.pattern.permute.xlu0 10
  %553 = vperm.xlu0 %552, %v228
  %v554 = vpop.permute.xlu0 %553
  %556 = vset.pattern.permute.xlu0 10
  %557 = vperm.xlu0 %556, %v229
  %v558 = vpop.permute.xlu0 %557
  %560 = vset.pattern.permute.xlu0 10
  %561 = vperm.xlu0 %560, %v230
  %v562 = vpop.permute.xlu0 %561
  %564 = vset.pattern.permute.xlu0 10
  %565 = vperm.xlu0 %564, %v231
  %v566 = vpop.permute.xlu0 %565
  %v568 = vmul.f32 %v545, %v554
  %v569 = vmul.f32 %v547, %v558
  %v570 = vmul.f32 %v549, %v562
  %v571 = vmul.f32 %v551, %v566
  %v572 = vadd.f32 %v540, %v568
  %v573 = vadd.f32 %v541, %v569
  %v574 = vadd.f32 %v542, %v570
  %v575 = vadd.f32 %v543, %v571
  %576 = vrot.lane.b32.xlu0 %v224, 109
  %v577 = vpop.permute.xlu0 %576
  %578 = vrot.lane.b32.xlu0 %v225, 109
  %v579 = vpop.permute.xlu0 %578
  %580 = vrot.lane.b32.xlu0 %v226, 109
  %v581 = vpop.permute.xlu0 %580
  %582 = vrot.lane.b32.xlu0 %v227, 109
  %v583 = vpop.permute.xlu0 %582
  %584 = vset.pattern.permute.xlu0 11
  %585 = vperm.xlu0 %584, %v228
  %v586 = vpop.permute.xlu0 %585
  %588 = vset.pattern.permute.xlu0 11
  %589 = vperm.xlu0 %588, %v229
  %v590 = vpop.permute.xlu0 %589
  %592 = vset.pattern.permute.xlu0 11
  %593 = vperm.xlu0 %592, %v230
  %v594 = vpop.permute.xlu0 %593
  %596 = vset.pattern.permute.xlu0 11
  %597 = vperm.xlu0 %596, %v231
  %v598 = vpop.permute.xlu0 %597
  %v600 = vmul.f32 %v577, %v586
  %v601 = vmul.f32 %v579, %v590
  %v602 = vmul.f32 %v581, %v594
  %v603 = vmul.f32 %v583, %v598
  %v604 = vadd.f32 %v572, %v600
  %v605 = vadd.f32 %v573, %v601
  %v606 = vadd.f32 %v574, %v602
  %v607 = vadd.f32 %v575, %v603
  %608 = vrot.lane.b32.xlu0 %v224, 104
  %v609 = vpop.permute.xlu0 %608
  %610 = vrot.lane.b32.xlu0 %v225, 104
  %v611 = vpop.permute.xlu0 %610
  %612 = vrot.lane.b32.xlu0 %v226, 104
  %v613 = vpop.permute.xlu0 %612
  %614 = vrot.lane.b32.xlu0 %v227, 104
  %v615 = vpop.permute.xlu0 %614
  %616 = vset.pattern.permute.xlu0 12
  %617 = vperm.xlu0 %616, %v228
  %v618 = vpop.permute.xlu0 %617
  %620 = vset.pattern.permute.xlu0 12
  %621 = vperm.xlu0 %620, %v229
  %v622 = vpop.permute.xlu0 %621
  %624 = vset.pattern.permute.xlu0 12
  %625 = vperm.xlu0 %624, %v230
  %v626 = vpop.permute.xlu0 %625
  %628 = vset.pattern.permute.xlu0 12
  %629 = vperm.xlu0 %628, %v231
  %v630 = vpop.permute.xlu0 %629
  %v632 = vmul.f32 %v609, %v618
  %v633 = vmul.f32 %v611, %v622
  %v634 = vmul.f32 %v613, %v626
  %v635 = vmul.f32 %v615, %v630
  %v636 = vadd.f32 %v604, %v632
  %v637 = vadd.f32 %v605, %v633
  %v638 = vadd.f32 %v606, %v634
  %v639 = vadd.f32 %v607, %v635
  %640 = vrot.lane.b32.xlu0 %v224, 103
  %v641 = vpop.permute.xlu0 %640
  %642 = vrot.lane.b32.xlu0 %v225, 103
  %v643 = vpop.permute.xlu0 %642
  %644 = vrot.lane.b32.xlu0 %v226, 103
  %v645 = vpop.permute.xlu0 %644
  %646 = vrot.lane.b32.xlu0 %v227, 103
  %v647 = vpop.permute.xlu0 %646
  %648 = vset.pattern.permute.xlu0 13
  %649 = vperm.xlu0 %648, %v228
  %v650 = vpop.permute.xlu0 %649
  %652 = vset.pattern.permute.xlu0 13
  %653 = vperm.xlu0 %652, %v229
  %v654 = vpop.permute.xlu0 %653
  %656 = vset.pattern.permute.xlu0 13
  %657 = vperm.xlu0 %656, %v230
  %v658 = vpop.permute.xlu0 %657
  %660 = vset.pattern.permute.xlu0 13
  %661 = vperm.xlu0 %660, %v231
  %v662 = vpop.permute.xlu0 %661
  %v664 = vmul.f32 %v641, %v650
  %v665 = vmul.f32 %v643, %v654
  %v666 = vmul.f32 %v645, %v658
  %v667 = vmul.f32 %v647, %v662
  %v668 = vadd.f32 %v636, %v664
  %v669 = vadd.f32 %v637, %v665
  %v670 = vadd.f32 %v638, %v666
  %v671 = vadd.f32 %v639, %v667
  %672 = vrot.lane.b32.xlu0 %v224, 102
  %v673 = vpop.permute.xlu0 %672
  %674 = vrot.lane.b32.xlu0 %v225, 102
  %v675 = vpop.permute.xlu0 %674
  %676 = vrot.lane.b32.xlu0 %v226, 102
  %v677 = vpop.permute.xlu0 %676
  %678 = vrot.lane.b32.xlu0 %v227, 102
  %v679 = vpop.permute.xlu0 %678
  %680 = vset.pattern.permute.xlu0 14
  %681 = vperm.xlu0 %680, %v228
  %v682 = vpop.permute.xlu0 %681
  %684 = vset.pattern.permute.xlu0 14
  %685 = vperm.xlu0 %684, %v229
  %v686 = vpop.permute.xlu0 %685
  %688 = vset.pattern.permute.xlu0 14
  %689 = vperm.xlu0 %688, %v230
  %v690 = vpop.permute.xlu0 %689
  %692 = vset.pattern.permute.xlu0 14
  %693 = vperm.xlu0 %692, %v231
  %v694 = vpop.permute.xlu0 %693
  %v696 = vmul.f32 %v673, %v682
  %v697 = vmul.f32 %v675, %v686
  %v698 = vmul.f32 %v677, %v690
  %v699 = vmul.f32 %v679, %v694
  %v700 = vadd.f32 %v668, %v696
  %v701 = vadd.f32 %v669, %v697
  %v702 = vadd.f32 %v670, %v698
  %v703 = vadd.f32 %v671, %v699
  %704 = vrot.lane.b32.xlu0 %v224, 101
  %v705 = vpop.permute.xlu0 %704
  %706 = vrot.lane.b32.xlu0 %v225, 101
  %v707 = vpop.permute.xlu0 %706
  %708 = vrot.lane.b32.xlu0 %v226, 101
  %v709 = vpop.permute.xlu0 %708
  %710 = vrot.lane.b32.xlu0 %v227, 101
  %v711 = vpop.permute.xlu0 %710
  %712 = vset.pattern.permute.xlu0 15
  %713 = vperm.xlu0 %712, %v228
  %v714 = vpop.permute.xlu0 %713
  %716 = vset.pattern.permute.xlu0 15
  %717 = vperm.xlu0 %716, %v229
  %v718 = vpop.permute.xlu0 %717
  %720 = vset.pattern.permute.xlu0 15
  %721 = vperm.xlu0 %720, %v230
  %v722 = vpop.permute.xlu0 %721
  %724 = vset.pattern.permute.xlu0 15
  %725 = vperm.xlu0 %724, %v231
  %v726 = vpop.permute.xlu0 %725
  %v728 = vmul.f32 %v705, %v714
  %v729 = vmul.f32 %v707, %v718
  %v730 = vmul.f32 %v709, %v722
  %v731 = vmul.f32 %v711, %v726
  %v732 = vadd.f32 %v700, %v728
  %v733 = vadd.f32 %v701, %v729
  %v734 = vadd.f32 %v702, %v730
  %v735 = vadd.f32 %v703, %v731
  %v736 = vadd.f32 %v732, %v733
  %v737 = vadd.f32 %v736, %v734
  %v738 = vadd.f32 %v737, %v735
  %v739 = vrot.slane %v738, 4
  %v740 = vadd.f32 %v738, %v739
  %v741 = vrot.slane %v740, 2
  %v742 = vadd.f32 %v740, %v741
  %v743 = vrot.slane %v742, 1
  %v744 = vadd.f32 %v742, %v743
  %745 = vst [vmem:[%s4] sm:$0x1] %v744
  // Predicated region
  $region18: #{single_disc_forward.1} parent=0 // pred_check
    _
  $region19: #{single_disc_forward.1} parent=0 // pred_check_branch
    %747 = sbr.rel (0) target = $region21
  $region20: #{single_disc_forward.1} parent=0 // pred_region
    _
  $region21: #{single_disc_forward.1} parent=0 // pred_fallthru
    _
  // Predicated region
  $region22: #{single_disc_forward.1} parent=0 // pred_check
    _
  $region23: #{single_disc_forward.1} parent=0 // pred_check_branch
    %749 = sbr.rel (0) target = $region25
  $region24: #{single_disc_forward.1} parent=0 // pred_region
    _
  $region25: #{single_disc_forward.1} parent=0 // pred_fallthru
    _

</llo_original>
